<compile_context>
chip_gen: v6e
topology: v6e:2x2x1
jax: 0.10.0
libtpu: 0.0.40
codegen_flags: <defaults>
</compile_context>

<pallas_src>
import functools

import jax
import jax.numpy as jnp
from jax.experimental import pallas as pl
from jax.experimental.pallas import tpu as pltpu

EPS = 1e-6


def _round_up(x, m):
    return ((x + m - 1) // m) * m


# ----------------------------------------------------------------------------
# Sum/mean reduction kernel
# ----------------------------------------------------------------------------
def _laplace_nll_sum_kernel(loc_ref, scale_ref, tgt_ref, out_ref, acc_ref, *, eps):
    # loc_ref/scale_ref/tgt_ref: (tile_rows, lane_width)
    # out_ref: (1, 8, 128) per-core block, acc_ref: (8, lane_width) f32 scratch.
    i = pl.program_id(1)

    @pl.when(i == 0)
    def _():
        acc_ref[...] = jnp.zeros_like(acc_ref)

    loc = loc_ref[...].astype(jnp.float32)
    scale = jnp.maximum(scale_ref[...].astype(jnp.float32), eps)
    tgt = tgt_ref[...].astype(jnp.float32)

    nll = jnp.log(2.0 * scale) + jnp.abs(tgt - loc) / scale

    # Per-lane partial sums: fold sublane groups with VPU adds into a
    # lane-dense (8, lane_width) accumulator.  (tile_rows is a multiple of 8.)
    acc_ref[...] += jnp.sum(nll.reshape(-1, 8, nll.shape[-1]), axis=0)

    @pl.when(i == pl.num_programs(1) - 1)
    def _():
        # Single XLU reduce per core, once per kernel.
        total = jnp.sum(acc_ref[...])
        out_ref[...] = jnp.full(out_ref.shape, total, dtype=out_ref.dtype)


def _laplace_nll_reduce(loc, scale, tgt, n, *, eps, reduction,
                        lane_width, tile_rows, num_cores):
    rows_needed = pl.cdiv(n, lane_width)
    if tile_rows is None:
        rows_per_core = pl.cdiv(rows_needed, num_cores)
        tile_rows = max(8, min(512, _round_up(rows_per_core, 8)))
    assert tile_rows % 8 == 0

    tiles_per_core = pl.cdiv(rows_needed, num_cores * tile_rows)
    padded_rows = num_cores * tiles_per_core * tile_rows
    pad = padded_rows * lane_width - n

    # Padding contributes exactly zero NLL: loc=target=0, scale=0.5.
    loc_p = jnp.pad(loc, (0, pad)).reshape(padded_rows, lane_width)
    tgt_p = jnp.pad(tgt, (0, pad)).reshape(padded_rows, lane_width)
    scale_p = jnp.pad(scale, (0, pad), constant_values=0.5).reshape(
        padded_rows, lane_width)

    kernel = functools.partial(_laplace_nll_sum_kernel, eps=eps)
    row_spec = pl.BlockSpec(
        (tile_rows, lane_width), lambda c, i: (c * tiles_per_core + i, 0))

    out = pl.pallas_call(
        kernel,
        out_shape=jax.ShapeDtypeStruct((num_cores, 8, 128), jnp.float32),
        grid_spec=pltpu.PrefetchScalarGridSpec(
            num_scalar_prefetch=0,
            grid=(num_cores, tiles_per_core),
            in_specs=[row_spec, row_spec, row_spec],
            out_specs=pl.BlockSpec((1, 8, 128), lambda c, i: (c, 0, 0)),
            scratch_shapes=[pltpu.VMEM((8, lane_width), jnp.float32)],
        ),
        compiler_params=pltpu.CompilerParams(
            dimension_semantics=("parallel", "arbitrary"),
            vmem_limit_bytes=32 * 1024 * 1024,
        ),
    )(loc_p, scale_p, tgt_p)

    total = jnp.sum(out[:, 0, 0])
    if reduction == "sum":
        return total
    return total / jnp.float32(n)


# ----------------------------------------------------------------------------
# reduction='none' elementwise kernel
# ----------------------------------------------------------------------------
def _laplace_nll_elem_kernel(loc_ref, scale_ref, tgt_ref, out_ref, *, eps):
    loc = loc_ref[...].astype(jnp.float32)
    scale = jnp.maximum(scale_ref[...].astype(jnp.float32), eps)
    tgt = tgt_ref[...].astype(jnp.float32)
    out_ref[...] = jnp.log(2.0 * scale) + jnp.abs(tgt - loc) / scale


def _laplace_nll_none(pred, target, *, eps):
    d = pred.shape[-1] // 2
    out_shape_orig = target.shape

    loc2 = pred[..., :d].reshape(-1, d)
    scale2 = pred[..., d:].reshape(-1, d)
    tgt2 = target.reshape(-1, d)
    r = loc2.shape[0]

    d_pad = _round_up(d, 128)
    # Row tile: multiple of 8, capped so 3 in + 1 out double-buffered blocks
    # stay well under scoped VMEM.
    tile_rows = min(256, _round_up(r, 8))
    cap = max(8, ((2 * 1024 * 1024) // (d_pad * 4)) // 8 * 8)
    tile_rows = max(8, min(tile_rows, cap))
    r_pad = _round_up(r, tile_rows)

    def pad2(x, cval=0.0):
        return jnp.pad(x, ((0, r_pad - r), (0, d_pad - d)), constant_values=cval)

    loc_p = pad2(loc2)
    tgt_p = pad2(tgt2)
    scale_p = pad2(scale2, 0.5)  # padded lanes stay finite; sliced off below.

    spec = pl.BlockSpec((tile_rows, d_pad), lambda i: (i, 0))
    kernel = functools.partial(_laplace_nll_elem_kernel, eps=eps)

    out = pl.pallas_call(
        kernel,
        out_shape=jax.ShapeDtypeStruct((r_pad, d_pad), jnp.float32),
        grid_spec=pltpu.PrefetchScalarGridSpec(
            num_scalar_prefetch=0,
            grid=(r_pad // tile_rows,),
            in_specs=[spec, spec, spec],
            out_specs=spec,
        ),
        compiler_params=pltpu.CompilerParams(
            dimension_semantics=("parallel",),
            vmem_limit_bytes=32 * 1024 * 1024,
        ),
    )(loc_p, scale_p, tgt_p)

    return out[:r, :d].reshape(out_shape_orig)


# ----------------------------------------------------------------------------
# Public entry point (matches LaplaceNLLLoss.forward)
# ----------------------------------------------------------------------------
def laplace_nll_loss(pred, target, *, eps=EPS, reduction="mean",
                     lane_width=512, tile_rows=None, num_cores=2):
    """pred: (..., 2*D), target: (..., D).  reduction in {'mean','sum','none'}."""
    two_d = pred.shape[-1]
    d = two_d // 2
    assert two_d == 2 * d and target.shape[-1] == d

    if reduction == "none":
        return _laplace_nll_none(pred, target, eps=eps)
    if reduction not in ("mean", "sum"):
        raise ValueError(f"{reduction} is not a valid value for reduction")

    # Wrapper-side split into lane-dense 1-D streams (layout plumbing only).
    loc = pred[..., :d].reshape(-1)
    scale = pred[..., d:].reshape(-1)
    tgt = target.reshape(-1)
    n = tgt.shape[0]  # true element count (static)

    return _laplace_nll_reduce(loc, scale, tgt, n, eps=eps, reduction=reduction,
                               lane_width=lane_width, tile_rows=tile_rows,
                               num_cores=num_cores)


# ----------------------------------------------------------------------------
# Pure-JAX reference
# ----------------------------------------------------------------------------
def laplace_nll_ref(pred, target, eps=EPS, reduction="mean"):
    d = pred.shape[-1] // 2
    loc, scale = pred[..., :d], pred[..., d:]
    scale = jnp.maximum(scale, eps)
    nll = jnp.log(2.0 * scale) + jnp.abs(target - loc) / scale
    if reduction == "mean":
        return jnp.mean(nll)
    if reduction == "sum":
        return jnp.sum(nll)
    return nll


if __name__ == "__main__":
    key = jax.random.PRNGKey(0)

    # Test 1: typical shape (batch=2, seq=8, 2*hidden=64) -> target (2, 8, 32).
    k1, k2 = jax.random.split(key)
    pred = jax.random.normal(k1, (2, 8, 64), dtype=jnp.float32)
    pred = pred.at[..., 32:].set(jnp.abs(pred[..., 32:]) * 0.5)
    target = jax.random.normal(k2, (2, 8, 32), dtype=jnp.float32)

    out_mean = jax.block_until_ready(laplace_nll_loss(pred, target, reduction="mean"))
    ref_mean = laplace_nll_ref(pred, target, reduction="mean")
    assert jnp.allclose(out_mean, ref_mean, rtol=1e-5, atol=1e-5), (out_mean, ref_mean)

    out_sum = jax.block_until_ready(laplace_nll_loss(pred, target, reduction="sum"))
    ref_sum = laplace_nll_ref(pred, target, reduction="sum")
    assert jnp.allclose(out_sum, ref_sum, rtol=1e-5, atol=1e-4), (out_sum, ref_sum)

    out_none = jax.block_until_ready(laplace_nll_loss(pred, target, reduction="none"))
    ref_none = laplace_nll_ref(pred, target, reduction="none")
    assert out_none.shape == ref_none.shape
    assert jnp.allclose(out_none, ref_none, rtol=1e-5, atol=1e-5)

    # Test 2: ragged shape exercising padding + both grid cores (d=13).
    k3, k4 = jax.random.split(k1)
    pred2 = jax.random.normal(k3, (3, 5, 26), dtype=jnp.float32)
    pred2 = pred2.at[..., 13:].set(jnp.abs(pred2[..., 13:]) * 0.3 + 1e-7)
    target2 = jax.random.normal(k4, (3, 5, 13), dtype=jnp.float32)

    out2 = jax.block_until_ready(laplace_nll_loss(pred2, target2, reduction="mean"))
    ref2 = laplace_nll_ref(pred2, target2, reduction="mean")
    assert jnp.allclose(out2, ref2, rtol=1e-5, atol=1e-5), (out2, ref2)

    out2n = jax.block_until_ready(laplace_nll_loss(pred2, target2, reduction="none"))
    ref2n = laplace_nll_ref(pred2, target2, reduction="none")
    assert jnp.allclose(out2n, ref2n, rtol=1e-5, atol=1e-5)

    print("KERNEL_OK")
</pallas_src>

<mosaic_0001>
module attributes {stable_mosaic.version = 11 : i64} {
  func.func @_laplace_nll_sum_kernel(%arg0: i32, %arg1: i32, %arg2: memref<8x512xf32, #tpu.memory_space<vmem>>, %arg3: memref<8x512xf32, #tpu.memory_space<vmem>>, %arg4: memref<8x512xf32, #tpu.memory_space<vmem>>, %arg5: memref<1x8x128xf32, #tpu.memory_space<vmem>>, %arg6: memref<8x512xf32, #tpu.memory_space<vmem>>) attributes {dimension_semantics = [#tpu.dimension_semantics<parallel>, #tpu.dimension_semantics<arbitrary>], iteration_bounds = array<i64: 2, 1>, scalar_prefetch = 0 : i64, scratch_operands = 1 : i64, tpu.core_type = #tpu.core_type<tc>, window_params = [{transform_indices = @transform_0, window_bounds = array<i64: 8, 512>}, {transform_indices = @transform_1, window_bounds = array<i64: 8, 512>}, {transform_indices = @transform_2, window_bounds = array<i64: 8, 512>}, {transform_indices = @transform_3, window_bounds = array<i64: 1, 8, 128>}]} {
    %c0_i32 = arith.constant 0 : i32
    %0 = arith.cmpi eq, %arg1, %c0_i32 : i32
    %1 = arith.extui %0 : i1 to i32
    %c0_i32_0 = arith.constant 0 : i32
    %2 = arith.cmpi ne, %1, %c0_i32_0 : i32
    scf.if %2 {
      %cst_14 = arith.constant 0.000000e+00 : f32
      %23 = vector.broadcast %cst_14 : f32 to vector<8x512xf32>
      %c0_15 = arith.constant 0 : index
      %c0_16 = arith.constant 0 : index
      %24 = vector.load %arg6[%c0_15, %c0_16] : memref<8x512xf32, #tpu.memory_space<vmem>>, vector<8x512xf32>
      tpu.vector_store %arg6[%c0_15, %c0_16], %23 {strides = array<i32>} : memref<8x512xf32, #tpu.memory_space<vmem>>, vector<8x512xf32>,
    } else {
    }
    %c0 = arith.constant 0 : index
    %c0_1 = arith.constant 0 : index
    %3 = vector.load %arg2[%c0, %c0_1] : memref<8x512xf32, #tpu.memory_space<vmem>>, vector<8x512xf32>
    %c0_2 = arith.constant 0 : index
    %c0_3 = arith.constant 0 : index
    %4 = vector.load %arg3[%c0_2, %c0_3] : memref<8x512xf32, #tpu.memory_space<vmem>>, vector<8x512xf32>
    %cst = arith.constant 9.99999997E-7 : f32
    %5 = vector.broadcast %cst : f32 to vector<8x512xf32>
    %6 = arith.maximumf %4, %5 : vector<8x512xf32>
    %c0_4 = arith.constant 0 : index
    %c0_5 = arith.constant 0 : index
    %7 = vector.load %arg4[%c0_4, %c0_5] : memref<8x512xf32, #tpu.memory_space<vmem>>, vector<8x512xf32>
    %cst_6 = arith.constant 2.000000e+00 : f32
    %8 = vector.broadcast %cst_6 : f32 to vector<8x512xf32>
    %9 = arith.mulf %8, %6 : vector<8x512xf32>
    %10 = math.log %9 : vector<8x512xf32>
    %11 = arith.subf %7, %3 : vector<8x512xf32>
    %12 = math.absf %11 : vector<8x512xf32>
    %13 = arith.divf %12, %6 : vector<8x512xf32>
    %14 = arith.addf %10, %13 : vector<8x512xf32>
    %c0_7 = arith.constant 0 : index
    %c0_8 = arith.constant 0 : index
    %15 = vector.load %arg6[%c0_7, %c0_8] : memref<8x512xf32, #tpu.memory_space<vmem>>, vector<8x512xf32>
    %16 = vector.shape_cast %14 : vector<8x512xf32> to vector<1x8x512xf32>
    %cst_9 = arith.constant dense<0.000000e+00> : vector<8x512xf32>
    %17 = vector.multi_reduction <add>, %16, %cst_9 [0] : vector<1x8x512xf32> to vector<8x512xf32>
    %18 = arith.addf %15, %17 : vector<8x512xf32>
    %c0_10 = arith.constant 0 : index
    %c0_11 = arith.constant 0 : index
    %19 = vector.load %arg6[%c0_10, %c0_11] : memref<8x512xf32, #tpu.memory_space<vmem>>, vector<8x512xf32>
    tpu.vector_store %arg6[%c0_10, %c0_11], %18 {strides = array<i32>} : memref<8x512xf32, #tpu.memory_space<vmem>>, vector<8x512xf32>,
    %c0_i32_12 = arith.constant 0 : i32
    %20 = arith.cmpi eq, %arg1, %c0_i32_12 : i32
    %21 = arith.extui %20 : i1 to i32
    %c0_i32_13 = arith.constant 0 : i32
    %22 = arith.cmpi ne, %21, %c0_i32_13 : i32
    scf.if %22 {
      %c0_14 = arith.constant 0 : index
      %c0_15 = arith.constant 0 : index
      %23 = vector.load %arg6[%c0_14, %c0_15] : memref<8x512xf32, #tpu.memory_space<vmem>>, vector<8x512xf32>
      %24 = vector.shape_cast %23 : vector<8x512xf32> to vector<1x8x512xf32>
      %cst_16 = arith.constant dense<0.000000e+00> : vector<1xf32>
      %25 = vector.multi_reduction <add>, %24, %cst_16 [1, 2] : vector<1x8x512xf32> to vector<1xf32>
      %26 = vector.shape_cast %25 : vector<1xf32> to vector<1x1x1xf32>
      %27 = vector.extract %26[0, 0, 0] : f32 from vector<1x1x1xf32>
      %28 = vector.broadcast %27 : f32 to vector<1x8x128xf32>
      %c0_17 = arith.constant 0 : index
      %c0_18 = arith.constant 0 : index
      %c0_19 = arith.constant 0 : index
      %29 = vector.load %arg5[%c0_17, %c0_18, %c0_19] : memref<1x8x128xf32, #tpu.memory_space<vmem>>, vector<1x8x128xf32>
      tpu.vector_store %arg5[%c0_17, %c0_18, %c0_19], %28 {strides = array<i32>} : memref<1x8x128xf32, #tpu.memory_space<vmem>>, vector<1x8x128xf32>,
    } else {
    }
    return
  }
  func.func @transform_0(%arg0: i32, %arg1: i32) -> (i32, i32) {
    %c1_i32 = arith.constant 1 : i32
    %0 = arith.muli %arg0, %c1_i32 : i32
    %1 = arith.addi %0, %arg1 : i32
    %c0_i32 = arith.constant 0 : i32
    %c0_i32_0 = arith.constant 0 : i32
    return %1, %c0_i32 : i32, i32
  }
  func.func @transform_1(%arg0: i32, %arg1: i32) -> (i32, i32) {
    %c1_i32 = arith.constant 1 : i32
    %0 = arith.muli %arg0, %c1_i32 : i32
    %1 = arith.addi %0, %arg1 : i32
    %c0_i32 = arith.constant 0 : i32
    %c0_i32_0 = arith.constant 0 : i32
    return %1, %c0_i32 : i32, i32
  }
  func.func @transform_2(%arg0: i32, %arg1: i32) -> (i32, i32) {
    %c1_i32 = arith.constant 1 : i32
    %0 = arith.muli %arg0, %c1_i32 : i32
    %1 = arith.addi %0, %arg1 : i32
    %c0_i32 = arith.constant 0 : i32
    %c0_i32_0 = arith.constant 0 : i32
    return %1, %c0_i32 : i32, i32
  }
  func.func @transform_3(%arg0: i32, %arg1: i32) -> (i32, i32, i32) {
    %c0_i32 = arith.constant 0 : i32
    %c0_i32_0 = arith.constant 0 : i32
    %c0_i32_1 = arith.constant 0 : i32
    return %arg0, %c0_i32, %c0_i32_0 : i32, i32, i32
  }
}

</mosaic_0001>

<llo_original>
// kernel: tpu_custom_call.1
$region0: #{tpu_custom_call.1}
  #allocation0 [shape = 'u32[]', space=smem, size = 0x4, offset = 0x4, fixed_abs, tag = 'smem constant byte address 0x4 - core index']
  #allocation1 [shape = 'u32[144,128]{1,0:T(1,128)}', space=vmem, size = 0x12000, scoped, tag = 'internal scratch']
  #allocation2 [shape = 'f32[8,512]{1,0:T(8,128)}', space=vmem, size = 0x4000, scoped, tag = 'scratch operand']
  %s0 = inlined_call_operand.hbm [shape: f32[16,512], index: 0, kind: input, shape index: {}]
  %s1 = inlined_call_operand.hbm [shape: f32[16,512], index: 1, kind: input, shape index: {}]
  %s2 = inlined_call_operand.hbm [shape: f32[16,512], index: 2, kind: input, shape index: {}]
  %s3 = inlined_call_operand.hbm [shape: f32[2,8,128], index: 3, kind: output, shape index: {}]
  %s4 = sld [smem:[#allocation0]]
  $region65: #{tpu_custom_call.1} parent=0
    _
  %s6 = ssub.s32 1, %s4
  %s7 = scalar_select 0, %s6, %s4
  $region1: #{tpu_custom_call.1} parent=0
    #allocation3 [shape = 'u8[32768]{0}', space=vmem, size = 0x8000, scoped, tag = 'input window, operand 0']
    #allocation4 [shape = 's32[2]{0}', space=sflag, size = 0x8, scoped, tag = 'scoped memory for tpu_custom_call.1']
    #allocation5 [shape = 's32[2]{0}', space=sflag, size = 0x8, scoped, tag = 'scoped memory for tpu_custom_call.1']
    #allocation6 [shape = 'u8[32768]{0}', space=vmem, size = 0x8000, scoped, tag = 'input window, operand 1']
    #allocation7 [shape = 's32[2]{0}', space=sflag, size = 0x8, scoped, tag = 'scoped memory for tpu_custom_call.1']
    #allocation8 [shape = 'u8[32768]{0}', space=vmem, size = 0x8000, scoped, tag = 'input window, operand 2']
    #allocation9 [shape = 'u8[8192]{0}', space=vmem, size = 0x2000, scoped, tag = 'output window, operand 0']
    %8 = vsyncpa [#allocation4], 0
    %s9 = scalar_lea.sflag [#allocation4], 1
    %10 = vsyncpa %s9, 0
    %11 = vsyncpa [#allocation7], 0
    %s12 = scalar_lea.sflag [#allocation7], 1
    %13 = vsyncpa %s12, 0
    %14 = vsyncpa [#allocation5], 0
    %s15 = scalar_lea.sflag [#allocation5], 1
    %16 = vsyncpa %s15, 0
    loop: start=0, step=1, limit=4
    $region2: #{tpu_custom_call.1} parent=1 // loop_pre_header
      _
    $region3: #{tpu_custom_call.1} parent=1 // loop_header
      %s18 = sphi 0, %s22
      %p19 = scmp.ge.s32.totalorder %s18, 4
      %s25 = sphi 0, %s37
      %s26 = sphi 0, %s33
      %s27 = sphi 0, %s25
      %s28 = sphi 0, %s26
      %s29 = sphi 0, %s27
      %s30 = sphi 0, %s28
      %s42 = sphi 0, %s44
      %s45 = sphi 0, %s42
      %s46 = sphi 0, %s45
      %s62 = sphi 0, %s46
      %s70 = sphi 0, %s72
      %s73 = sphi 0, %s70
      %s74 = sphi 0, %s73
      %s90 = sphi 0, %s74
      %s98 = sphi 0, %s100
      %s101 = sphi 0, %s98
      %s102 = sphi 0, %s101
      %s118 = sphi 0, %s102
      %s124 = sphi 0, %s126
      %s127 = sphi 0, %s124
      %s128 = sphi 0, %s127
      %s144 = sphi 0, %s128
    $region4: #{tpu_custom_call.1} parent=1 // loop_header_branch
      %21 = sbr.rel (%p19) target = $region8
    $region5: #{tpu_custom_call.1} parent=1 // loop_body
      %s23 = ssub.s32 %s18, 1
      %s24 = ssub.s32 %s18, 2
      %s31 = sadd.s32 1, %s26
      %p32 = scmp.ge.s32.totalorder %s31, 1
      %s33 = scalar_select %p32, 0, %s31
      %s34 = sadd.s32 1, %s25
      %s35 = scalar_select %p32, %s34, %s25
      %p36 = scmp.ge.s32.totalorder %s35, 2
      %s37 = scalar_select %p36, 0, %s35
      %s38 = sadd.s32 %s25, %s26
      %s39 = sadd.s32 %s37, %s33
      %s40 = ssub.s32 %s38, %s39
      %p41 = scmp.eq.s32.totalorder %s40, 0
      %s43 = sadd.s32 %s42, 1
      %s44 = scalar_select %p41, %s42, %s43
      %p47 = pneg %p41
      %p48 = scmp.eq.s32.totalorder %s18, 1
      %p49 = por %p47, %p48
      %p50 = scmp.ne.s32.totalorder %s42, %s45
      %p51 = scmp.eq.s32.totalorder %s18, 0
      %p52 = por %p50, %p51
      %p53 = scmp.ne.s32.totalorder %s42, %s45
      %p54 = scmp.eq.s32.totalorder %s23, 1
      %p55 = por %p53, %p54
      %p56 = scmp.ne.s32.totalorder %s45, %s46
      %p57 = scmp.eq.s32.totalorder %s23, 0
      %p58 = por %p56, %p57
      %p59 = scmp.ne.s32.totalorder %s45, %s46
      %p60 = scmp.eq.s32.totalorder %s24, 1
      %p61 = por %p59, %p60
      %p63 = scmp.ne.s32.totalorder %s46, %s62
      %p64 = scmp.eq.s32.totalorder %s24, 0
      %p65 = por %p63, %p64
      %s66 = sadd.s32 %s25, %s26
      %s67 = sadd.s32 %s37, %s33
      %s68 = ssub.s32 %s66, %s67
      %p69 = scmp.eq.s32.totalorder %s68, 0
      %s71 = sadd.s32 %s70, 1
      %s72 = scalar_select %p69, %s70, %s71
      %p75 = pneg %p69
      %p76 = scmp.eq.s32.totalorder %s18, 1
      %p77 = por %p75, %p76
      %p78 = scmp.ne.s32.totalorder %s70, %s73
      %p79 = scmp.eq.s32.totalorder %s18, 0
      %p80 = por %p78, %p79
      %p81 = scmp.ne.s32.totalorder %s70, %s73
      %p82 = scmp.eq.s32.totalorder %s23, 1
      %p83 = por %p81, %p82
      %p84 = scmp.ne.s32.totalorder %s73, %s74
      %p85 = scmp.eq.s32.totalorder %s23, 0
      %p86 = por %p84, %p85
      %p87 = scmp.ne.s32.totalorder %s73, %s74
      %p88 = scmp.eq.s32.totalorder %s24, 1
      %p89 = por %p87, %p88
      %p91 = scmp.ne.s32.totalorder %s74, %s90
      %p92 = scmp.eq.s32.totalorder %s24, 0
      %p93 = por %p91, %p92
      %s94 = sadd.s32 %s25, %s26
      %s95 = sadd.s32 %s37, %s33
      %s96 = ssub.s32 %s94, %s95
      %p97 = scmp.eq.s32.totalorder %s96, 0
      %s99 = sadd.s32 %s98, 1
      %s100 = scalar_select %p97, %s98, %s99
      %p103 = pneg %p97
      %p104 = scmp.eq.s32.totalorder %s18, 1
      %p105 = por %p103, %p104
      %p106 = scmp.ne.s32.totalorder %s98, %s101
      %p107 = scmp.eq.s32.totalorder %s18, 0
      %p108 = por %p106, %p107
      %p109 = scmp.ne.s32.totalorder %s98, %s101
      %p110 = scmp.eq.s32.totalorder %s23, 1
      %p111 = por %p109, %p110
      %p112 = scmp.ne.s32.totalorder %s101, %s102
      %p113 = scmp.eq.s32.totalorder %s23, 0
      %p114 = por %p112, %p113
      %p115 = scmp.ne.s32.totalorder %s101, %s102
      %p116 = scmp.eq.s32.totalorder %s24, 1
      %p117 = por %p115, %p116
      %p119 = scmp.ne.s32.totalorder %s102, %s118
      %p120 = scmp.eq.s32.totalorder %s24, 0
      %p121 = por %p119, %p120
      %s122 = ssub.s32 %s25, %s37
      %p123 = scmp.eq.s32.totalorder %s122, 0
      %s125 = sadd.s32 %s124, 1
      %s126 = scalar_select %p123, %s124, %s125
      %p129 = pneg %p123
      %p130 = scmp.eq.s32.totalorder %s18, 1
      %p131 = por %p129, %p130
      %p132 = scmp.ne.s32.totalorder %s124, %s127
      %p133 = scmp.eq.s32.totalorder %s18, 0
      %p134 = por %p132, %p133
      %p135 = scmp.ne.s32.totalorder %s124, %s127
      %p136 = scmp.eq.s32.totalorder %s23, 1
      %p137 = por %p135, %p136
      %p138 = scmp.ne.s32.totalorder %s127, %s128
      %p139 = scmp.eq.s32.totalorder %s23, 0
      %p140 = por %p138, %p139
      %p141 = scmp.ne.s32.totalorder %s127, %s128
      %p142 = scmp.eq.s32.totalorder %s24, 1
      %p143 = por %p141, %p142
      %p145 = scmp.ne.s32.totalorder %s128, %s144
      %p146 = scmp.eq.s32.totalorder %s24, 0
      %p147 = por %p145, %p146
      %p148 = scmp.le.s32.totalorder 1, %s18
      %p149 = scmp.lt.s32.totalorder %s18, 3
      %p150 = pnand %p148, %p149
      %p151 = pneg %p150
      // Predicated region
      $region9: #{tpu_custom_call.1} parent=5 // pred_check
        _
      $region10: #{tpu_custom_call.1} parent=5 // pred_check_branch
        %153 = sbr.rel (%p150) target = $region12
      $region11: #{tpu_custom_call.1} parent=5 // pred_region
        %s154 = ssub.s32 %s18, 1
      $region12: #{tpu_custom_call.1} parent=5 // pred_fallthru
        _
      %p155 = scmp.lt.s32.totalorder %s18, 2
      // Predicated region
      $region13: #{tpu_custom_call.1} parent=5 // pred_check
        %p156 = pneg %p155
      $region14: #{tpu_custom_call.1} parent=5 // pred_check_branch
        %158 = sbr.rel (%p156) target = $region16
      $region15: #{tpu_custom_call.1} parent=5 // pred_region
        // Predicated region
        $region17: #{tpu_custom_call.1} parent=15 // pred_check
          %p159 = pneg %p52
        $region18: #{tpu_custom_call.1} parent=15 // pred_check_branch
          %161 = sbr.rel (%p159) target = $region20
        $region19: #{tpu_custom_call.1} parent=15 // pred_region
          %s162 = sand.u32 %s42, 1
          %s163 = scalar_lea.sflag [#allocation4], %s162
          %s164 = sand.u32 %s42, 1
          %s165 = smul.addr %s164, 32
          %s166 = scalar_lea.vmem [#allocation3], %s165
          %s167 = sadd.s32 %s25, %s26
          %s169 = ssub.s32 512, 512
          %170 = vsyncadd %s163, %s169
          %s171 = smul.addr %s167, 4
          %s172 = smul.addr %s171, 128
          %s173 = scalar_lea.hbm %s0, %s172
          %s175 = sshll.u32 %s166, 4
          %s176 = int_to_ptr.vmem [resolvable:$true] %s175
          %178 = dma.hbm_to_vmem [thread:$0]  %s173, 512, %s176, %s163
        $region20: #{tpu_custom_call.1} parent=15 // pred_fallthru
          _
        // Predicated region
        $region21: #{tpu_custom_call.1} parent=15 // pred_check
          %p179 = pneg %p80
        $region22: #{tpu_custom_call.1} parent=15 // pred_check_branch
          %181 = sbr.rel (%p179) target = $region24
        $region23: #{tpu_custom_call.1} parent=15 // pred_region
          %s182 = sand.u32 %s18, 1
          %s183 = scalar_lea.sflag [#allocation7], %s182
          %s184 = sand.u32 %s70, 1
          %s185 = smul.addr %s184, 32
          %s186 = scalar_lea.vmem [#allocation6], %s185
          %s187 = sadd.s32 %s25, %s26
          %s189 = ssub.s32 512, 512
          %190 = vsyncadd %s183, %s189
          %s191 = smul.addr %s187, 4
          %s192 = smul.addr %s191, 128
          %s193 = scalar_lea.hbm %s1, %s192
          %s195 = sshll.u32 %s186, 4
          %s196 = int_to_ptr.vmem [resolvable:$true] %s195
          %198 = dma.hbm_to_vmem [thread:$0]  %s193, 512, %s196, %s183
        $region24: #{tpu_custom_call.1} parent=15 // pred_fallthru
          _
        // Predicated region
        $region25: #{tpu_custom_call.1} parent=15 // pred_check
          %p199 = pneg %p108
        $region26: #{tpu_custom_call.1} parent=15 // pred_check_branch
          %201 = sbr.rel (%p199) target = $region28
        $region27: #{tpu_custom_call.1} parent=15 // pred_region
          %s202 = sand.u32 %s18, 1
          %s203 = scalar_lea.sflag [#allocation7], %s202
          %s204 = sand.u32 %s98, 1
          %s205 = smul.addr %s204, 32
          %s206 = scalar_lea.vmem [#allocation8], %s205
          %s207 = sadd.s32 %s25, %s26
          %s209 = ssub.s32 512, 512
          %210 = vsyncadd %s203, %s209
          %s211 = smul.addr %s207, 4
          %s212 = smul.addr %s211, 128
          %s213 = scalar_lea.hbm %s2, %s212
          %s215 = sshll.u32 %s206, 4
          %s216 = int_to_ptr.vmem [resolvable:$true] %s215
          %218 = dma.hbm_to_vmem [thread:$0]  %s213, 512, %s216, %s203
        $region28: #{tpu_custom_call.1} parent=15 // pred_fallthru
          _
      $region16: #{tpu_custom_call.1} parent=5 // pred_fallthru
        _
      %p219 = scmp.le.s32.totalorder 1, %s18
      %p220 = scmp.lt.s32.totalorder %s18, 3
      %p221 = pnand %p219, %p220
      %p222 = pneg %p221
      // Predicated region
      $region29: #{tpu_custom_call.1} parent=5 // pred_check
        _
      $region30: #{tpu_custom_call.1} parent=5 // pred_check_branch
        %224 = sbr.rel (%p221) target = $region32
      $region31: #{tpu_custom_call.1} parent=5 // pred_region
        %s225 = ssub.s32 %s18, 1
        %s226 = sand.u32 %s45, 1
        %s227 = scalar_lea.sflag [#allocation4], %s226
        %s228 = sand.u32 %s45, 1
        %s229 = smul.addr %s228, 32
        %s230 = scalar_lea.vmem [#allocation3], %s229
        // Predicated region
        $region33: #{tpu_custom_call.1} parent=31 // pred_check
          %p231 = pneg %p58
        $region34: #{tpu_custom_call.1} parent=31 // pred_check_branch
          %233 = sbr.rel (%p231) target = $region36
        $region35: #{tpu_custom_call.1} parent=31 // pred_region
          %234 = dma.done %s227, 512
        $region36: #{tpu_custom_call.1} parent=31 // pred_fallthru
          _
        %s235 = sand.u32 %s23, 1
        %s236 = scalar_lea.sflag [#allocation7], %s235
        %s237 = sand.u32 %s73, 1
        %s238 = smul.addr %s237, 32
        %s239 = scalar_lea.vmem [#allocation6], %s238
        // Predicated region
        $region37: #{tpu_custom_call.1} parent=31 // pred_check
          %p240 = pneg %p86
        $region38: #{tpu_custom_call.1} parent=31 // pred_check_branch
          %242 = sbr.rel (%p240) target = $region40
        $region39: #{tpu_custom_call.1} parent=31 // pred_region
          %243 = dma.done %s236, 512
        $region40: #{tpu_custom_call.1} parent=31 // pred_fallthru
          _
        %s244 = sand.u32 %s23, 1
        %s245 = scalar_lea.sflag [#allocation7], %s244
        %s246 = sand.u32 %s101, 1
        %s247 = smul.addr %s246, 32
        %s248 = scalar_lea.vmem [#allocation8], %s247
        // Predicated region
        $region41: #{tpu_custom_call.1} parent=31 // pred_check
          %p249 = pneg %p114
        $region42: #{tpu_custom_call.1} parent=31 // pred_check_branch
          %251 = sbr.rel (%p249) target = $region44
        $region43: #{tpu_custom_call.1} parent=31 // pred_region
          %252 = dma.done %s245, 512
        $region44: #{tpu_custom_call.1} parent=31 // pred_fallthru
          _
        %s253 = sand.u32 %s45, 1
        %s254 = scalar_lea.sflag [#allocation4], %s253
        %s255 = sand.u32 %s45, 1
        %s256 = smul.addr %s255, 32
        %s257 = scalar_lea.vmem [#allocation3], %s256
        %p258 = pneg %p58
        %p259 = pneg %p55
        %s260 = sand.u32 %s23, 1
        %s261 = scalar_lea.sflag [#allocation7], %s260
        %s262 = sand.u32 %s73, 1
        %s263 = smul.addr %s262, 32
        %s264 = scalar_lea.vmem [#allocation6], %s263
        %p265 = pneg %p86
        %p266 = pneg %p83
        %s267 = sand.u32 %s23, 1
        %s268 = scalar_lea.sflag [#allocation7], %s267
        %s269 = sand.u32 %s101, 1
        %s270 = smul.addr %s269, 32
        %s271 = scalar_lea.vmem [#allocation8], %s270
        %p272 = pneg %p114
        %p273 = pneg %p111
        %p274 = pneg %p140
        %p275 = pneg %p137
        %s276 = sand.u32 %s127, 1
        %s277 = scalar_lea.sflag [#allocation5], %s276
        %s278 = sand.u32 %s127, 1
        %s279 = smul.addr %s278, 8
        %s280 = scalar_lea.vmem [#allocation9], %s279
        %s281 = sadd.s32 %s27, %s28
        %s282 = sadd.s32 %s27, %s28
        %s283 = sadd.s32 %s27, %s28
        %p284 = scmp.eq.s32.totalorder %s28, 0
        // Predicated region
        $region45: #{tpu_custom_call.1} parent=31 // pred_check
          %p285 = pneg %p284
        $region46: #{tpu_custom_call.1} parent=31 // pred_check_branch
          %287 = sbr.rel (%p285) target = $region48
        $region47: #{tpu_custom_call.1} parent=31 // pred_region
          %288 = vst [vmem:[#allocation2] sm:$0xff] 0.0
          %289 = vst [vmem:[#allocation2 + $0x8] sm:$0xff] 0.0
          %290 = vst [vmem:[#allocation2 + $0x10] sm:$0xff] 0.0
          %291 = vst [vmem:[#allocation2 + $0x18] sm:$0xff] 0.0
        $region48: #{tpu_custom_call.1} parent=31 // pred_fallthru
          _
        %v292 = vld [vmem:[%s230] sm:$0xff]
        %v293 = vld [vmem:[%s230 + $0x8] sm:$0xff]
        %v294 = vld [vmem:[%s230 + $0x10] sm:$0xff]
        %v295 = vld [vmem:[%s230 + $0x18] sm:$0xff]
        %v296 = vld [vmem:[%s239] sm:$0xff]
        %v297 = vld [vmem:[%s239 + $0x8] sm:$0xff]
        %v298 = vld [vmem:[%s239 + $0x10] sm:$0xff]
        %v299 = vld [vmem:[%s239 + $0x18] sm:$0xff]
        %v300 = vmax.f32 %v296, 1e-06
        %v301 = vmax.f32 %v297, 1e-06
        %v302 = vmax.f32 %v298, 1e-06
        %v303 = vmax.f32 %v299, 1e-06
        %v304 = vld [vmem:[%s248] sm:$0xff]
        %v305 = vld [vmem:[%s248 + $0x8] sm:$0xff]
        %v306 = vld [vmem:[%s248 + $0x10] sm:$0xff]
        %v307 = vld [vmem:[%s248 + $0x18] sm:$0xff]
        %v308 = vmul.f32 %v300, 2.0
        %v309 = vmul.f32 %v301, 2.0
        %v310 = vmul.f32 %v302, 2.0
        %v311 = vmul.f32 %v303, 2.0
        %v312 = vlog2.pop %v308
        %v313 = vmul.f32 %v312, 0.6931472
        %v314 = vlog2.pop %v309
        %v315 = vmul.f32 %v314, 0.6931472
        %v316 = vlog2.pop %v310
        %v317 = vmul.f32 %v316, 0.6931472
        %v318 = vlog2.pop %v311
        %v319 = vmul.f32 %v318, 0.6931472
        %v320 = vsub.f32 %v304, %v292
        %v321 = vsub.f32 %v305, %v293
        %v322 = vsub.f32 %v306, %v294
        %v323 = vsub.f32 %v307, %v295
        %v324 = vand.u32 2147483647, %v320
        %v325 = vand.u32 2147483647, %v321
        %v326 = vand.u32 2147483647, %v322
        %v327 = vand.u32 2147483647, %v323
        %v328 = vrcp.pop %v300
        %v329 = vmul.f32 %v324, %v328
        %v330 = vrcp.pop %v301
        %v331 = vmul.f32 %v325, %v330
        %v332 = vrcp.pop %v302
        %v333 = vmul.f32 %v326, %v332
        %v334 = vrcp.pop %v303
        %v335 = vmul.f32 %v327, %v334
        %v336 = vadd.f32 %v313, %v329
        %v337 = vadd.f32 %v315, %v331
        %v338 = vadd.f32 %v317, %v333
        %v339 = vadd.f32 %v319, %v335
        %v340 = vld [vmem:[#allocation2] sm:$0xff]
        %v341 = vld [vmem:[#allocation2 + $0x8] sm:$0xff]
        %v342 = vld [vmem:[#allocation2 + $0x10] sm:$0xff]
        %v343 = vld [vmem:[#allocation2 + $0x18] sm:$0xff]
        %v344 = vadd.f32 %v336, 0.0
        %v345 = vadd.f32 %v337, 0.0
        %v346 = vadd.f32 %v338, 0.0
        %v347 = vadd.f32 %v339, 0.0
        %v348 = vadd.f32 %v340, %v344
        %v349 = vadd.f32 %v341, %v345
        %v350 = vadd.f32 %v342, %v346
        %v351 = vadd.f32 %v343, %v347
        %352 = vst [vmem:[#allocation2] sm:$0xff] %v348
        %353 = vst [vmem:[#allocation2 + $0x8] sm:$0xff] %v349
        %354 = vst [vmem:[#allocation2 + $0x10] sm:$0xff] %v350
        %355 = vst [vmem:[#allocation2 + $0x18] sm:$0xff] %v351
        // Predicated region
        $region49: #{tpu_custom_call.1} parent=31 // pred_check
          %p356 = pneg %p284
        $region50: #{tpu_custom_call.1} parent=31 // pred_check_branch
          %358 = sbr.rel (%p356) target = $region52
        $region51: #{tpu_custom_call.1} parent=31 // pred_region
          %v359 = vld [vmem:[#allocation2] sm:$0xff]
          %v360 = vld [vmem:[#allocation2 + $0x8] sm:$0xff]
          %v361 = vld [vmem:[#allocation2 + $0x10] sm:$0xff]
          %v362 = vld [vmem:[#allocation2 + $0x18] sm:$0xff]
          %v363 = vadd.f32 %v359, %v360
          %v364 = vadd.f32 %v363, %v361
          %v365 = vadd.f32 %v364, %v362
          %366 = vadd.xlane.f32.xlu0 %v365
          %v367 = vpop.xlane.xlu0 %366
          %v368 = vrot.slane %v367, 4
          %v369 = vadd.f32 %v367, %v368
          %v370 = vrot.slane %v369, 2
          %v371 = vadd.f32 %v369, %v370
          %v372 = vrot.slane %v371, 1
          %v373 = vadd.f32 %v371, %v372
          %s374 = vtos %v373
          %v375 = vstv %s374
          %376 = vst [vmem:[%s280] sm:$0xff] %v375
        $region52: #{tpu_custom_call.1} parent=31 // pred_fallthru
          _
        %s377 = sand.u32 %s127, 1
        %s378 = scalar_lea.sflag [#allocation5], %s377
        %s379 = sand.u32 %s127, 1
        %s380 = smul.addr %s379, 8
        %s381 = scalar_lea.vmem [#allocation9], %s380
        // Predicated region
        $region53: #{tpu_custom_call.1} parent=31 // pred_check
          %p382 = pneg %p137
        $region54: #{tpu_custom_call.1} parent=31 // pred_check_branch
          %384 = sbr.rel (%p382) target = $region56
        $region55: #{tpu_custom_call.1} parent=31 // pred_region
          %s386 = ssub.s32 128, 128
          %387 = vsyncadd %s378, %s386
          %s388 = smul.addr %s27, 128
          %s389 = scalar_lea.hbm %s3, %s388
          %s391 = sshll.u32 %s381, 4
          %s392 = int_to_ptr.vmem [resolvable:$true] %s391
          %394 = dma.vmem_to_hbm [thread:$0]  %s392, 128, %s389, %s378
        $region56: #{tpu_custom_call.1} parent=31 // pred_fallthru
          _
      $region32: #{tpu_custom_call.1} parent=5 // pred_fallthru
        _
      %p395 = scmp.le.s32.totalorder 2, %s18
      // Predicated region
      $region57: #{tpu_custom_call.1} parent=5 // pred_check
        %p396 = pneg %p395
      $region58: #{tpu_custom_call.1} parent=5 // pred_check_branch
        %398 = sbr.rel (%p396) target = $region60
      $region59: #{tpu_custom_call.1} parent=5 // pred_region
        %s399 = ssub.s32 %s18, 2
        // Predicated region
        $region61: #{tpu_custom_call.1} parent=59 // pred_check
          %p400 = pneg %p143
        $region62: #{tpu_custom_call.1} parent=59 // pred_check_branch
          %402 = sbr.rel (%p400) target = $region64
        $region63: #{tpu_custom_call.1} parent=59 // pred_region
          %s403 = sand.u32 %s128, 1
          %s404 = scalar_lea.sflag [#allocation5], %s403
          %s405 = sand.u32 %s128, 1
          %s406 = smul.addr %s405, 8
          %s407 = scalar_lea.vmem [#allocation9], %s406
          %408 = dma.done %s404, 128
        $region64: #{tpu_custom_call.1} parent=59 // pred_fallthru
          _
      $region60: #{tpu_custom_call.1} parent=5 // pred_fallthru
        _
    $region6: #{tpu_custom_call.1} parent=1 // loop_footer
      %s22 = sadd.s32 1, %s18
    $region7: #{tpu_custom_call.1} parent=1 // loop_footer_branch
      %17 = sbr.rel target = $region3
    $region8: #{tpu_custom_call.1} parent=1 // loop_exit
      _
    %409 = vsyncpa [#allocation4], 1
    %s410 = scalar_lea.sflag [#allocation4], 1
    %411 = vsyncpa %s410, 1
    %412 = vsyncpa [#allocation7], 1
    %s413 = scalar_lea.sflag [#allocation7], 1
    %414 = vsyncpa %s413, 1
    %415 = vsyncpa [#allocation5], 1
    %s416 = scalar_lea.sflag [#allocation5], 1
    %417 = vsyncpa %s416, 1

</llo_original>
